<compile_context>
chip_gen: v7x
topology: tpu7x:2x2x1
jax: 0.10.0
libtpu: 0.0.40
codegen_flags: <defaults>
</compile_context>

<pallas_src>
import functools

import jax
import jax.numpy as jnp
from jax.experimental import pallas as pl
from jax.experimental.pallas import tpu as pltpu

HIDDEN = 256
OUT_PAD = 128          # lane-dense padded width of the final layer
MAX_TB = 2048          # batch tile cap (multiple of 128)


def _round_up(x, m):
    return ((x + m - 1) // m) * m


def _cdiv(a, b):
    return (a + b - 1) // b


def _choose_tiling(batch, max_tb):
    """Balanced batch tiles, multiple of 128, >=2 grid steps (v7x dual-TC)."""
    cap = max(128, (max_tb // 128) * 128)
    padded = _round_up(max(batch, 1), 128)
    num_tiles = max(2, _cdiv(padded, cap))
    tb = _round_up(_cdiv(padded, num_tiles), 128)   # tb <= cap by construction
    padded = num_tiles * tb
    return tb, padded, num_tiles


def _critic_kernel(s_ref, a_ref, w1s_ref, w1a_ref, b1_ref,
                   w2_ref, b2_ref, w3_ref, b3_ref, q_ref):
    # l1 (split K over s / a so the wrapper never materializes cat(s, a)) + ReLU.
    h1 = jnp.dot(s_ref[...], w1s_ref[...], preferred_element_type=jnp.float32)
    h1 = h1 + jnp.dot(a_ref[...], w1a_ref[...], preferred_element_type=jnp.float32)
    h1 = jnp.maximum(h1 + b1_ref[...], 0.0)                      # f32 VPU ops
    # l2 + ReLU (bf16 MXU inputs, f32 accumulate).
    h2 = jnp.dot(h1.astype(jnp.bfloat16), w2_ref[...],
                 preferred_element_type=jnp.float32)
    h2 = jnp.maximum(h2 + b2_ref[...], 0.0)
    # l3 (padded to 128 output lanes for the MXU).
    q = jnp.dot(h2.astype(jnp.bfloat16), w3_ref[...],
                preferred_element_type=jnp.float32)
    q = q + b3_ref[...]                 # (TB, 128); only column 0 is real
    # Lane-major output: transpose on the XLU (off the MXU critical path) and
    # store an (8, TB) slab; the wrapper reads the contiguous row 0.
    q_t = jnp.transpose(q)              # (128, TB)
    q_ref[...] = q_t[0:8, :]            # unmasked lane-dense (8, TB) store


@functools.partial(jax.jit, static_argnames=("max_tb",))
def critic_forward(s, a, params, max_tb=MAX_TB):
    """s: [B, s_dim], a: [B, a_dim]  ->  q: [B]   (matches torch squeeze(-1))."""
    w1, b1, w2, b2, w3, b3 = params
    B, s_dim = s.shape
    a_dim = a.shape[1]

    # ---- batch tiling / padding (balanced tiles, multiple of 128, >=2 steps) ----
    TB, padded_B, num_tiles = _choose_tiling(B, max_tb)
    pad_rows = padded_B - B
    if pad_rows:
        s = jnp.pad(s, ((0, pad_rows), (0, 0)))
        a = jnp.pad(a, ((0, pad_rows), (0, 0)))

    # ---- operand prep: bf16 matmul inputs, split w1, lane-dense-pad l3 ----
    s_bf = s.astype(jnp.bfloat16)
    a_bf = a.astype(jnp.bfloat16)
    w1s = w1[:s_dim].astype(jnp.bfloat16)          # [s_dim, 256]
    w1a = w1[s_dim:].astype(jnp.bfloat16)          # [a_dim, 256]
    w2_bf = w2.astype(jnp.bfloat16)                # [256, 256]
    w3_pad = jnp.zeros((HIDDEN, OUT_PAD), jnp.bfloat16).at[:, :1].set(
        w3.astype(jnp.bfloat16))                   # [256, 128], cols 1..127 zero
    b1_2d = b1.reshape(1, -1).astype(jnp.float32)  # [1, 256]
    b2_2d = b2.reshape(1, -1).astype(jnp.float32)  # [1, 256]
    b3_pad = jnp.zeros((1, OUT_PAD), jnp.float32).at[:, :1].set(
        b3.reshape(1, -1).astype(jnp.float32))     # [1, 128]

    resident = lambda shape: pl.BlockSpec(shape, lambda i: (0, 0))

    q_pad = pl.pallas_call(
        _critic_kernel,
        out_shape=jax.ShapeDtypeStruct((8, padded_B), jnp.float32),
        grid=(num_tiles,),
        in_specs=[
            pl.BlockSpec((TB, s_dim), lambda i: (i, 0)),   # streamed activations
            pl.BlockSpec((TB, a_dim), lambda i: (i, 0)),
            resident((s_dim, HIDDEN)),                     # weights stay resident
            resident((a_dim, HIDDEN)),
            resident((1, HIDDEN)),
            resident((HIDDEN, HIDDEN)),
            resident((1, HIDDEN)),
            resident((HIDDEN, OUT_PAD)),
            resident((1, OUT_PAD)),
        ],
        out_specs=pl.BlockSpec((8, TB), lambda i: (0, i)),  # lane-major output slab
        compiler_params=pltpu.CompilerParams(
            dimension_semantics=("parallel",),
            vmem_limit_bytes=32 * 1024 * 1024),
    )(s_bf, a_bf, w1s, w1a, b1_2d, w2_bf, b2_2d, w3_pad, b3_pad)

    # Row 0 holds q for all (padded) batch rows, contiguously; pad rows dropped.
    return q_pad[0, :B]


def init_critic_params(key, s_dim, a_dim):
    """nn.Linear default init U(-1/sqrt(fan_in), +1/sqrt(fan_in)).
    Weights stored as [in, out] (transposed relative to torch's [out, in])."""
    dims = [(s_dim + a_dim, HIDDEN), (HIDDEN, HIDDEN), (HIDDEN, 1)]
    params = []
    for fan_in, fan_out in dims:
        key, kw, kb = jax.random.split(key, 3)
        bound = 1.0 / jnp.sqrt(jnp.float32(fan_in))
        w = jax.random.uniform(kw, (fan_in, fan_out), jnp.float32, -bound, bound)
        b = jax.random.uniform(kb, (fan_out,), jnp.float32, -bound, bound)
        params += [w, b]
    return tuple(params)


if __name__ == "__main__":
    s_dim, a_dim, batch = 16, 8, 2

    key = jax.random.PRNGKey(0)
    key, ks, ka, kp = jax.random.split(key, 4)
    s = jax.random.normal(ks, (batch, s_dim), jnp.float32)
    a = jax.random.normal(ka, (batch, a_dim), jnp.float32)
    params = init_critic_params(kp, s_dim, a_dim)

    q = critic_forward(s, a, params)
    jax.block_until_ready(q)

    # Pure-JAX reference with the same bf16-in / f32-accumulate math.
    w1, b1, w2, b2, w3, b3 = params
    sa_bf = jnp.concatenate([s, a], axis=1).astype(jnp.bfloat16)
    h1 = jnp.maximum(jnp.dot(sa_bf, w1.astype(jnp.bfloat16),
                             preferred_element_type=jnp.float32) + b1, 0.0)
    h2 = jnp.maximum(jnp.dot(h1.astype(jnp.bfloat16), w2.astype(jnp.bfloat16),
                             preferred_element_type=jnp.float32) + b2, 0.0)
    ref = (jnp.dot(h2.astype(jnp.bfloat16), w3.astype(jnp.bfloat16),
                   preferred_element_type=jnp.float32) + b3)[:, 0]

    assert q.shape == (batch,), q.shape
    assert jnp.allclose(q, ref, atol=1e-3, rtol=1e-3), (q, ref)

    # Loose sanity check vs the pure-f32 math (bf16 rounding of 256-wide layers).
    ref32 = jnp.maximum(jnp.concatenate([s, a], 1) @ w1 + b1, 0.0)
    ref32 = jnp.maximum(ref32 @ w2 + b2, 0.0)
    ref32 = (ref32 @ w3 + b3)[:, 0]
    assert jnp.allclose(q, ref32, atol=5e-2, rtol=5e-2), (q, ref32)

    print("KERNEL_OK")
</pallas_src>

<mosaic_0001>
module attributes {stable_mosaic.version = 11 : i64} {
  func.func @_critic_kernel(%arg0: i32, %arg1: memref<128x16xbf16, #tpu.memory_space<vmem>>, %arg2: memref<128x8xbf16, #tpu.memory_space<vmem>>, %arg3: memref<16x256xbf16, #tpu.memory_space<vmem>>, %arg4: memref<8x256xbf16, #tpu.memory_space<vmem>>, %arg5: memref<1x256xf32, #tpu.memory_space<vmem>>, %arg6: memref<256x256xbf16, #tpu.memory_space<vmem>>, %arg7: memref<1x256xf32, #tpu.memory_space<vmem>>, %arg8: memref<256x128xbf16, #tpu.memory_space<vmem>>, %arg9: memref<1x128xf32, #tpu.memory_space<vmem>>, %arg10: memref<8x128xf32, #tpu.memory_space<vmem>>) attributes {dimension_semantics = [#tpu.dimension_semantics<parallel>], iteration_bounds = array<i64: 2>, scalar_prefetch = 0 : i64, scratch_operands = 0 : i64, tpu.core_type = #tpu.core_type<tc>, window_params = [{transform_indices = @transform_0, window_bounds = array<i64: 128, 16>}, {transform_indices = @transform_1, window_bounds = array<i64: 128, 8>}, {pipeline_mode = #tpu.pipeline_mode<synchronous>, transform_indices = @transform_2, window_bounds = array<i64: 16, 256>}, {pipeline_mode = #tpu.pipeline_mode<synchronous>, transform_indices = @transform_3, window_bounds = array<i64: 8, 256>}, {pipeline_mode = #tpu.pipeline_mode<synchronous>, transform_indices = @transform_4, window_bounds = array<i64: 1, 256>}, {pipeline_mode = #tpu.pipeline_mode<synchronous>, transform_indices = @transform_5, window_bounds = array<i64: 256, 256>}, {pipeline_mode = #tpu.pipeline_mode<synchronous>, transform_indices = @transform_6, window_bounds = array<i64: 1, 256>}, {pipeline_mode = #tpu.pipeline_mode<synchronous>, transform_indices = @transform_7, window_bounds = array<i64: 256, 128>}, {pipeline_mode = #tpu.pipeline_mode<synchronous>, transform_indices = @transform_8, window_bounds = array<i64: 1, 128>}, {transform_indices = @transform_9, window_bounds = array<i64: 8, 128>}]} {
    %c0 = arith.constant 0 : index
    %c0_0 = arith.constant 0 : index
    %0 = vector.load %arg1[%c0, %c0_0] : memref<128x16xbf16, #tpu.memory_space<vmem>>, vector<128x16xbf16>
    %c0_1 = arith.constant 0 : index
    %c0_2 = arith.constant 0 : index
    %1 = vector.load %arg3[%c0_1, %c0_2] : memref<16x256xbf16, #tpu.memory_space<vmem>>, vector<16x256xbf16>
    %cst = arith.constant dense<0.000000e+00> : vector<128x256xf32>
    %2 = tpu.matmul %0, %1, %cst {dimension_numbers = #tpu.dot_dimension_numbers<[1], [0], [0], [1], [0, 0, 1, 1], [], []>} : vector<128x16xbf16>, vector<16x256xbf16>, vector<128x256xf32> -> vector<128x256xf32>
    %c0_3 = arith.constant 0 : index
    %c0_4 = arith.constant 0 : index
    %3 = vector.load %arg2[%c0_3, %c0_4] : memref<128x8xbf16, #tpu.memory_space<vmem>>, vector<128x8xbf16>
    %c0_5 = arith.constant 0 : index
    %c0_6 = arith.constant 0 : index
    %4 = vector.load %arg4[%c0_5, %c0_6] : memref<8x256xbf16, #tpu.memory_space<vmem>>, vector<8x256xbf16>
    %cst_7 = arith.constant dense<0.000000e+00> : vector<128x256xf32>
    %5 = tpu.matmul %3, %4, %cst_7 {dimension_numbers = #tpu.dot_dimension_numbers<[1], [0], [0], [1], [0, 0, 1, 1], [], []>} : vector<128x8xbf16>, vector<8x256xbf16>, vector<128x256xf32> -> vector<128x256xf32>
    %6 = arith.addf %2, %5 : vector<128x256xf32>
    %c0_8 = arith.constant 0 : index
    %c0_9 = arith.constant 0 : index
    %7 = vector.load %arg5[%c0_8, %c0_9] : memref<1x256xf32, #tpu.memory_space<vmem>>, vector<1x256xf32>
    %8 = vector.broadcast %7 : vector<1x256xf32> to vector<128x256xf32>
    %9 = arith.addf %6, %8 : vector<128x256xf32>
    %cst_10 = arith.constant 0.000000e+00 : f32
    %10 = vector.broadcast %cst_10 : f32 to vector<128x256xf32>
    %11 = arith.maximumf %9, %10 : vector<128x256xf32>
    %12 = arith.truncf %11 : vector<128x256xf32> to vector<128x256xbf16>
    %c0_11 = arith.constant 0 : index
    %c0_12 = arith.constant 0 : index
    %13 = vector.load %arg6[%c0_11, %c0_12] : memref<256x256xbf16, #tpu.memory_space<vmem>>, vector<256x256xbf16>
    %cst_13 = arith.constant dense<0.000000e+00> : vector<128x256xf32>
    %14 = tpu.matmul %12, %13, %cst_13 {dimension_numbers = #tpu.dot_dimension_numbers<[1], [0], [0], [1], [0, 0, 1, 1], [], []>} : vector<128x256xbf16>, vector<256x256xbf16>, vector<128x256xf32> -> vector<128x256xf32>
    %c0_14 = arith.constant 0 : index
    %c0_15 = arith.constant 0 : index
    %15 = vector.load %arg7[%c0_14, %c0_15] : memref<1x256xf32, #tpu.memory_space<vmem>>, vector<1x256xf32>
    %16 = vector.broadcast %15 : vector<1x256xf32> to vector<128x256xf32>
    %17 = arith.addf %14, %16 : vector<128x256xf32>
    %cst_16 = arith.constant 0.000000e+00 : f32
    %18 = vector.broadcast %cst_16 : f32 to vector<128x256xf32>
    %19 = arith.maximumf %17, %18 : vector<128x256xf32>
    %20 = arith.truncf %19 : vector<128x256xf32> to vector<128x256xbf16>
    %c0_17 = arith.constant 0 : index
    %c0_18 = arith.constant 0 : index
    %21 = vector.load %arg8[%c0_17, %c0_18] : memref<256x128xbf16, #tpu.memory_space<vmem>>, vector<256x128xbf16>
    %cst_19 = arith.constant dense<0.000000e+00> : vector<128x128xf32>
    %22 = tpu.matmul %20, %21, %cst_19 {dimension_numbers = #tpu.dot_dimension_numbers<[1], [0], [0], [1], [0, 0, 1, 1], [], []>} : vector<128x256xbf16>, vector<256x128xbf16>, vector<128x128xf32> -> vector<128x128xf32>
    %c0_20 = arith.constant 0 : index
    %c0_21 = arith.constant 0 : index
    %23 = vector.load %arg9[%c0_20, %c0_21] : memref<1x128xf32, #tpu.memory_space<vmem>>, vector<1x128xf32>
    %24 = vector.broadcast %23 : vector<1x128xf32> to vector<128x128xf32>
    %25 = arith.addf %22, %24 : vector<128x128xf32>
    %26 = tpu.transpose %25, [1, 0] : vector<128x128xf32> -> vector<128x128xf32>
    %27 = vector.extract_strided_slice %26 {offsets = [0, 0], sizes = [8, 128], strides = [1, 1]} : vector<128x128xf32> to vector<8x128xf32>
    %c0_22 = arith.constant 0 : index
    %c0_23 = arith.constant 0 : index
    %28 = vector.load %arg10[%c0_22, %c0_23] : memref<8x128xf32, #tpu.memory_space<vmem>>, vector<8x128xf32>
    tpu.vector_store %arg10[%c0_22, %c0_23], %27 {strides = array<i32>} : memref<8x128xf32, #tpu.memory_space<vmem>>, vector<8x128xf32>,
    return
  }
  func.func @transform_0(%arg0: i32) -> (i32, i32) {
    %c0_i32 = arith.constant 0 : i32
    %c0_i32_0 = arith.constant 0 : i32
    return %arg0, %c0_i32 : i32, i32
  }
  func.func @transform_1(%arg0: i32) -> (i32, i32) {
    %c0_i32 = arith.constant 0 : i32
    %c0_i32_0 = arith.constant 0 : i32
    return %arg0, %c0_i32 : i32, i32
  }
  func.func @transform_2(%arg0: i32) -> (i32, i32) {
    %c0_i32 = arith.constant 0 : i32
    %c0_i32_0 = arith.constant 0 : i32
    %c0_i32_1 = arith.constant 0 : i32
    return %c0_i32, %c0_i32_0 : i32, i32
  }
  func.func @transform_3(%arg0: i32) -> (i32, i32) {
    %c0_i32 = arith.constant 0 : i32
    %c0_i32_0 = arith.constant 0 : i32
    %c0_i32_1 = arith.constant 0 : i32
    return %c0_i32, %c0_i32_0 : i32, i32
  }
  func.func @transform_4(%arg0: i32) -> (i32, i32) {
    %c0_i32 = arith.constant 0 : i32
    %c0_i32_0 = arith.constant 0 : i32
    %c0_i32_1 = arith.constant 0 : i32
    return %c0_i32, %c0_i32_0 : i32, i32
  }
  func.func @transform_5(%arg0: i32) -> (i32, i32) {
    %c0_i32 = arith.constant 0 : i32
    %c0_i32_0 = arith.constant 0 : i32
    %c0_i32_1 = arith.constant 0 : i32
    return %c0_i32, %c0_i32_0 : i32, i32
  }
  func.func @transform_6(%arg0: i32) -> (i32, i32) {
    %c0_i32 = arith.constant 0 : i32
    %c0_i32_0 = arith.constant 0 : i32
    %c0_i32_1 = arith.constant 0 : i32
    return %c0_i32, %c0_i32_0 : i32, i32
  }
  func.func @transform_7(%arg0: i32) -> (i32, i32) {
    %c0_i32 = arith.constant 0 : i32
    %c0_i32_0 = arith.constant 0 : i32
    %c0_i32_1 = arith.constant 0 : i32
    return %c0_i32, %c0_i32_0 : i32, i32
  }
  func.func @transform_8(%arg0: i32) -> (i32, i32) {
    %c0_i32 = arith.constant 0 : i32
    %c0_i32_0 = arith.constant 0 : i32
    %c0_i32_1 = arith.constant 0 : i32
    return %c0_i32, %c0_i32_0 : i32, i32
  }
  func.func @transform_9(%arg0: i32) -> (i32, i32) {
    %c0_i32 = arith.constant 0 : i32
    %c0_i32_0 = arith.constant 0 : i32
    return %c0_i32, %arg0 : i32, i32
  }
}

</mosaic_0001>

<llo_original>
// kernel: critic_forward.1
$region0: #{critic_forward.1}
  #allocation0 [shape = 'u32[]', space=smem, size = 0x4, offset = 0x4, fixed_abs, tag = 'smem constant byte address 0x4 - core index']
  #allocation1 [shape = 'u32[144,128]{1,0:T(1,128)}', space=vmem, size = 0x12000, scoped, tag = 'internal scratch']
  %s0 = inlined_call_operand.vmem [shape: bf16[256,16], index: 0, kind: input, shape index: {}]
  %s1 = inlined_call_operand.vmem [shape: bf16[256,8], index: 1, kind: input, shape index: {}]
  %s2 = inlined_call_operand.vmem [shape: bf16[16,256], index: 2, kind: input, shape index: {}]
  %s3 = inlined_call_operand.vmem [shape: bf16[8,256], index: 3, kind: input, shape index: {}]
  %s4 = inlined_call_operand.vmem [shape: f32[1,256], index: 4, kind: input, shape index: {}]
  %s5 = inlined_call_operand.vmem [shape: bf16[256,256], index: 5, kind: input, shape index: {}]
  %s6 = inlined_call_operand.vmem [shape: f32[1,256], index: 6, kind: input, shape index: {}]
  %s7 = inlined_call_operand.vmem [shape: bf16[256,128], index: 7, kind: input, shape index: {}]
  %s8 = inlined_call_operand.vmem [shape: f32[1,128], index: 8, kind: input, shape index: {}]
  %s9 = inlined_call_operand.vmem [shape: f32[8,256], index: 9, kind: output, shape index: {}]
  %s10 = sld [smem:[#allocation0]]
  $region69: #{critic_forward.1} parent=0
    _
  %s12 = ssub.s32 1, %s10
  %s13 = scalar_select 0, %s12, %s10
  loop: start=0, step=1, limit=4
  $region2: #{critic_forward.1} parent=0 // loop_pre_header
    _
  $region3: #{critic_forward.1} parent=0 // loop_header
    %s15 = sphi 0, %s19
    %p16 = scmp.ge.s32.totalorder %s15, 4
    %s25 = sphi 0, %s27
    %s28 = sphi 0, %s25
    %s29 = sphi 0, %s28
    %s45 = sphi 0, %s29
    %s51 = sphi 0, %s53
    %s54 = sphi 0, %s51
    %s55 = sphi 0, %s54
    %s71 = sphi 0, %s55
    %s75 = sphi 0, %s75
    %s77 = sphi 0, %s75
    %s78 = sphi 0, %s77
    %s92 = sphi 0, %s78
    %s96 = sphi 0, %s96
    %s98 = sphi 0, %s96
    %s99 = sphi 0, %s98
    %s113 = sphi 0, %s99
    %s117 = sphi 0, %s117
    %s119 = sphi 0, %s117
    %s120 = sphi 0, %s119
    %s134 = sphi 0, %s120
    %s138 = sphi 0, %s138
    %s140 = sphi 0, %s138
    %s141 = sphi 0, %s140
    %s155 = sphi 0, %s141
    %s159 = sphi 0, %s159
    %s161 = sphi 0, %s159
    %s162 = sphi 0, %s161
    %s176 = sphi 0, %s162
    %s180 = sphi 0, %s180
    %s182 = sphi 0, %s180
    %s183 = sphi 0, %s182
    %s197 = sphi 0, %s183
    %s201 = sphi 0, %s201
    %s203 = sphi 0, %s201
    %s204 = sphi 0, %s203
    %s218 = sphi 0, %s204
    %s224 = sphi 0, %s226
    %s227 = sphi 0, %s224
    %s228 = sphi 0, %s227
    %s244 = sphi 0, %s228
  $region4: #{critic_forward.1} parent=0 // loop_header_branch
    %18 = sbr.rel (%p16) target = $region8
  $region5: #{critic_forward.1} parent=0 // loop_body
    %s20 = ssub.s32 %s15, 1
    %s21 = ssub.s32 %s15, 2
    %s22 = sadd.s32 %s15, 1
    %s23 = ssub.s32 %s15, %s22
    %p24 = scmp.eq.s32.totalorder %s23, 0
    %s26 = sadd.s32 %s25, 1
    %s27 = scalar_select %p24, %s25, %s26
    %p30 = pneg %p24
    %p31 = scmp.eq.s32.totalorder %s15, 1
    %p32 = por %p30, %p31
    %p33 = scmp.ne.s32.totalorder %s25, %s28
    %p34 = scmp.eq.s32.totalorder %s15, 0
    %p35 = por %p33, %p34
    %p36 = scmp.ne.s32.totalorder %s25, %s28
    %p37 = scmp.eq.s32.totalorder %s20, 1
    %p38 = por %p36, %p37
    %p39 = scmp.ne.s32.totalorder %s28, %s29
    %p40 = scmp.eq.s32.totalorder %s20, 0
    %p41 = por %p39, %p40
    %p42 = scmp.ne.s32.totalorder %s28, %s29
    %p43 = scmp.eq.s32.totalorder %s21, 1
    %p44 = por %p42, %p43
    %p46 = scmp.ne.s32.totalorder %s29, %s45
    %p47 = scmp.eq.s32.totalorder %s21, 0
    %p48 = por %p46, %p47
    %s49 = ssub.s32 %s15, %s22
    %p50 = scmp.eq.s32.totalorder %s49, 0
    %s52 = sadd.s32 %s51, 1
    %s53 = scalar_select %p50, %s51, %s52
    %p56 = pneg %p50
    %p57 = scmp.eq.s32.totalorder %s15, 1
    %p58 = por %p56, %p57
    %p59 = scmp.ne.s32.totalorder %s51, %s54
    %p60 = scmp.eq.s32.totalorder %s15, 0
    %p61 = por %p59, %p60
    %p62 = scmp.ne.s32.totalorder %s51, %s54
    %p63 = scmp.eq.s32.totalorder %s20, 1
    %p64 = por %p62, %p63
    %p65 = scmp.ne.s32.totalorder %s54, %s55
    %p66 = scmp.eq.s32.totalorder %s20, 0
    %p67 = por %p65, %p66
    %p68 = scmp.ne.s32.totalorder %s54, %s55
    %p69 = scmp.eq.s32.totalorder %s21, 1
    %p70 = por %p68, %p69
    %p72 = scmp.ne.s32.totalorder %s55, %s71
    %p73 = scmp.eq.s32.totalorder %s21, 0
    %p74 = por %p72, %p73
    %s76 = sadd.s32 %s75, 1
    %p79 = scmp.eq.s32.totalorder %s15, 1
    %p80 = scmp.ne.s32.totalorder %s75, %s77
    %p81 = scmp.eq.s32.totalorder %s15, 0
    %p82 = por %p80, %p81
    %p83 = scmp.ne.s32.totalorder %s75, %s77
    %p84 = scmp.eq.s32.totalorder %s20, 1
    %p85 = por %p83, %p84
    %p86 = scmp.ne.s32.totalorder %s77, %s78
    %p87 = scmp.eq.s32.totalorder %s20, 0
    %p88 = por %p86, %p87
    %p89 = scmp.ne.s32.totalorder %s77, %s78
    %p90 = scmp.eq.s32.totalorder %s21, 1
    %p91 = por %p89, %p90
    %p93 = scmp.ne.s32.totalorder %s78, %s92
    %p94 = scmp.eq.s32.totalorder %s21, 0
    %p95 = por %p93, %p94
    %s97 = sadd.s32 %s96, 1
    %p100 = scmp.eq.s32.totalorder %s15, 1
    %p101 = scmp.ne.s32.totalorder %s96, %s98
    %p102 = scmp.eq.s32.totalorder %s15, 0
    %p103 = por %p101, %p102
    %p104 = scmp.ne.s32.totalorder %s96, %s98
    %p105 = scmp.eq.s32.totalorder %s20, 1
    %p106 = por %p104, %p105
    %p107 = scmp.ne.s32.totalorder %s98, %s99
    %p108 = scmp.eq.s32.totalorder %s20, 0
    %p109 = por %p107, %p108
    %p110 = scmp.ne.s32.totalorder %s98, %s99
    %p111 = scmp.eq.s32.totalorder %s21, 1
    %p112 = por %p110, %p111
    %p114 = scmp.ne.s32.totalorder %s99, %s113
    %p115 = scmp.eq.s32.totalorder %s21, 0
    %p116 = por %p114, %p115
    %s118 = sadd.s32 %s117, 1
    %p121 = scmp.eq.s32.totalorder %s15, 1
    %p122 = scmp.ne.s32.totalorder %s117, %s119
    %p123 = scmp.eq.s32.totalorder %s15, 0
    %p124 = por %p122, %p123
    %p125 = scmp.ne.s32.totalorder %s117, %s119
    %p126 = scmp.eq.s32.totalorder %s20, 1
    %p127 = por %p125, %p126
    %p128 = scmp.ne.s32.totalorder %s119, %s120
    %p129 = scmp.eq.s32.totalorder %s20, 0
    %p130 = por %p128, %p129
    %p131 = scmp.ne.s32.totalorder %s119, %s120
    %p132 = scmp.eq.s32.totalorder %s21, 1
    %p133 = por %p131, %p132
    %p135 = scmp.ne.s32.totalorder %s120, %s134
    %p136 = scmp.eq.s32.totalorder %s21, 0
    %p137 = por %p135, %p136
    %s139 = sadd.s32 %s138, 1
    %p142 = scmp.eq.s32.totalorder %s15, 1
    %p143 = scmp.ne.s32.totalorder %s138, %s140
    %p144 = scmp.eq.s32.totalorder %s15, 0
    %p145 = por %p143, %p144
    %p146 = scmp.ne.s32.totalorder %s138, %s140
    %p147 = scmp.eq.s32.totalorder %s20, 1
    %p148 = por %p146, %p147
    %p149 = scmp.ne.s32.totalorder %s140, %s141
    %p150 = scmp.eq.s32.totalorder %s20, 0
    %p151 = por %p149, %p150
    %p152 = scmp.ne.s32.totalorder %s140, %s141
    %p153 = scmp.eq.s32.totalorder %s21, 1
    %p154 = por %p152, %p153
    %p156 = scmp.ne.s32.totalorder %s141, %s155
    %p157 = scmp.eq.s32.totalorder %s21, 0
    %p158 = por %p156, %p157
    %s160 = sadd.s32 %s159, 1
    %p163 = scmp.eq.s32.totalorder %s15, 1
    %p164 = scmp.ne.s32.totalorder %s159, %s161
    %p165 = scmp.eq.s32.totalorder %s15, 0
    %p166 = por %p164, %p165
    %p167 = scmp.ne.s32.totalorder %s159, %s161
    %p168 = scmp.eq.s32.totalorder %s20, 1
    %p169 = por %p167, %p168
    %p170 = scmp.ne.s32.totalorder %s161, %s162
    %p171 = scmp.eq.s32.totalorder %s20, 0
    %p172 = por %p170, %p171
    %p173 = scmp.ne.s32.totalorder %s161, %s162
    %p174 = scmp.eq.s32.totalorder %s21, 1
    %p175 = por %p173, %p174
    %p177 = scmp.ne.s32.totalorder %s162, %s176
    %p178 = scmp.eq.s32.totalorder %s21, 0
    %p179 = por %p177, %p178
    %s181 = sadd.s32 %s180, 1
    %p184 = scmp.eq.s32.totalorder %s15, 1
    %p185 = scmp.ne.s32.totalorder %s180, %s182
    %p186 = scmp.eq.s32.totalorder %s15, 0
    %p187 = por %p185, %p186
    %p188 = scmp.ne.s32.totalorder %s180, %s182
    %p189 = scmp.eq.s32.totalorder %s20, 1
    %p190 = por %p188, %p189
    %p191 = scmp.ne.s32.totalorder %s182, %s183
    %p192 = scmp.eq.s32.totalorder %s20, 0
    %p193 = por %p191, %p192
    %p194 = scmp.ne.s32.totalorder %s182, %s183
    %p195 = scmp.eq.s32.totalorder %s21, 1
    %p196 = por %p194, %p195
    %p198 = scmp.ne.s32.totalorder %s183, %s197
    %p199 = scmp.eq.s32.totalorder %s21, 0
    %p200 = por %p198, %p199
    %s202 = sadd.s32 %s201, 1
    %p205 = scmp.eq.s32.totalorder %s15, 1
    %p206 = scmp.ne.s32.totalorder %s201, %s203
    %p207 = scmp.eq.s32.totalorder %s15, 0
    %p208 = por %p206, %p207
    %p209 = scmp.ne.s32.totalorder %s201, %s203
    %p210 = scmp.eq.s32.totalorder %s20, 1
    %p211 = por %p209, %p210
    %p212 = scmp.ne.s32.totalorder %s203, %s204
    %p213 = scmp.eq.s32.totalorder %s20, 0
    %p214 = por %p212, %p213
    %p215 = scmp.ne.s32.totalorder %s203, %s204
    %p216 = scmp.eq.s32.totalorder %s21, 1
    %p217 = por %p215, %p216
    %p219 = scmp.ne.s32.totalorder %s204, %s218
    %p220 = scmp.eq.s32.totalorder %s21, 0
    %p221 = por %p219, %p220
    %s222 = ssub.s32 %s15, %s22
    %p223 = scmp.eq.s32.totalorder %s222, 0
    %s225 = sadd.s32 %s224, 1
    %s226 = scalar_select %p223, %s224, %s225
    %p229 = pneg %p223
    %p230 = scmp.eq.s32.totalorder %s15, 1
    %p231 = por %p229, %p230
    %p232 = scmp.ne.s32.totalorder %s224, %s227
    %p233 = scmp.eq.s32.totalorder %s15, 0
    %p234 = por %p232, %p233
    %p235 = scmp.ne.s32.totalorder %s224, %s227
    %p236 = scmp.eq.s32.totalorder %s20, 1
    %p237 = por %p235, %p236
    %p238 = scmp.ne.s32.totalorder %s227, %s228
    %p239 = scmp.eq.s32.totalorder %s20, 0
    %p240 = por %p238, %p239
    %p241 = scmp.ne.s32.totalorder %s227, %s228
    %p242 = scmp.eq.s32.totalorder %s21, 1
    %p243 = por %p241, %p242
    %p245 = scmp.ne.s32.totalorder %s228, %s244
    %p246 = scmp.eq.s32.totalorder %s21, 0
    %p247 = por %p245, %p246
    %p248 = scmp.le.s32.totalorder 1, %s15
    %p249 = scmp.lt.s32.totalorder %s15, 3
    %p250 = pnand %p248, %p249
    %p251 = pneg %p250
    // Predicated region
    $region9: #{critic_forward.1} parent=5 // pred_check
      _
    $region10: #{critic_forward.1} parent=5 // pred_check_branch
      %253 = sbr.rel (%p250) target = $region12
    $region11: #{critic_forward.1} parent=5 // pred_region
      %s254 = ssub.s32 %s15, 1
      // Predicated region
      $region13: #{critic_forward.1} parent=11 // pred_check
        %p255 = pneg %p88
      $region14: #{critic_forward.1} parent=11 // pred_check_branch
        %257 = sbr.rel (%p255) target = $region16
      $region15: #{critic_forward.1} parent=11 // pred_region
        _
      $region16: #{critic_forward.1} parent=11 // pred_fallthru
        _
      // Predicated region
      $region17: #{critic_forward.1} parent=11 // pred_check
        %p258 = pneg %p109
      $region18: #{critic_forward.1} parent=11 // pred_check_branch
        %260 = sbr.rel (%p258) target = $region20
      $region19: #{critic_forward.1} parent=11 // pred_region
        _
      $region20: #{critic_forward.1} parent=11 // pred_fallthru
        _
      // Predicated region
      $region21: #{critic_forward.1} parent=11 // pred_check
        %p261 = pneg %p130
      $region22: #{critic_forward.1} parent=11 // pred_check_branch
        %263 = sbr.rel (%p261) target = $region24
      $region23: #{critic_forward.1} parent=11 // pred_region
        _
      $region24: #{critic_forward.1} parent=11 // pred_fallthru
        _
      // Predicated region
      $region25: #{critic_forward.1} parent=11 // pred_check
        %p264 = pneg %p151
      $region26: #{critic_forward.1} parent=11 // pred_check_branch
        %266 = sbr.rel (%p264) target = $region28
      $region27: #{critic_forward.1} parent=11 // pred_region
        _
      $region28: #{critic_forward.1} parent=11 // pred_fallthru
        _
      // Predicated region
      $region29: #{critic_forward.1} parent=11 // pred_check
        %p267 = pneg %p172
      $region30: #{critic_forward.1} parent=11 // pred_check_branch
        %269 = sbr.rel (%p267) target = $region32
      $region31: #{critic_forward.1} parent=11 // pred_region
        _
      $region32: #{critic_forward.1} parent=11 // pred_fallthru
        _
      // Predicated region
      $region33: #{critic_forward.1} parent=11 // pred_check
        %p270 = pneg %p193
      $region34: #{critic_forward.1} parent=11 // pred_check_branch
        %272 = sbr.rel (%p270) target = $region36
      $region35: #{critic_forward.1} parent=11 // pred_region
        _
      $region36: #{critic_forward.1} parent=11 // pred_fallthru
        _
      // Predicated region
      $region37: #{critic_forward.1} parent=11 // pred_check
        %p273 = pneg %p214
      $region38: #{critic_forward.1} parent=11 // pred_check_branch
        %275 = sbr.rel (%p273) target = $region40
      $region39: #{critic_forward.1} parent=11 // pred_region
        _
      $region40: #{critic_forward.1} parent=11 // pred_fallthru
        _
    $region12: #{critic_forward.1} parent=5 // pred_fallthru
      _
    %p276 = scmp.lt.s32.totalorder %s15, 2
    // Predicated region
    $region41: #{critic_forward.1} parent=5 // pred_check
      %p277 = pneg %p276
    $region42: #{critic_forward.1} parent=5 // pred_check_branch
      %279 = sbr.rel (%p277) target = $region44
    $region43: #{critic_forward.1} parent=5 // pred_region
      // Predicated region
      $region45: #{critic_forward.1} parent=43 // pred_check
        %p280 = pneg %p35
      $region46: #{critic_forward.1} parent=43 // pred_check_branch
        %282 = sbr.rel (%p280) target = $region48
      $region47: #{critic_forward.1} parent=43 // pred_region
        %s283 = smul.u32 16, %s15
        %p284 = scmp.lt.s32.totalorder %s283, 31
        %s285 = scalar_select %p284, %s283, 31
        %s286 = smul.addr %s285, 4
        %s287 = scalar_lea.vmem %s0, %s286
        %s288 = smul.u32 16, %s15
      $region48: #{critic_forward.1} parent=43 // pred_fallthru
        _
      // Predicated region
      $region49: #{critic_forward.1} parent=43 // pred_check
        %p289 = pneg %p61
      $region50: #{critic_forward.1} parent=43 // pred_check_branch
        %291 = sbr.rel (%p289) target = $region52
      $region51: #{critic_forward.1} parent=43 // pred_region
        %s292 = smul.u32 16, %s15
        %p293 = scmp.lt.s32.totalorder %s292, 31
        %s294 = scalar_select %p293, %s292, 31
        %s295 = smul.addr %s294, 4
        %s296 = scalar_lea.vmem %s1, %s295
        %s297 = smul.u32 16, %s15
      $region52: #{critic_forward.1} parent=43 // pred_fallthru
        _
    $region44: #{critic_forward.1} parent=5 // pred_fallthru
      _
    %p298 = scmp.le.s32.totalorder 1, %s15
    %p299 = scmp.lt.s32.totalorder %s15, 3
    %p300 = pnand %p298, %p299
    %p301 = pneg %p300
    // Predicated region
    $region53: #{critic_forward.1} parent=5 // pred_check
      _
    $region54: #{critic_forward.1} parent=5 // pred_check_branch
      %303 = sbr.rel (%p300) target = $region56
    $region55: #{critic_forward.1} parent=5 // pred_region
      %s304 = ssub.s32 %s15, 1
      %s305 = smul.u32 16, %s20
      %p306 = scmp.lt.s32.totalorder %s305, 31
      %s307 = scalar_select %p306, %s305, 31
      %s308 = smul.addr %s307, 4
      %s309 = scalar_lea.vmem %s0, %s308
      %p310 = pneg %p41
      %p311 = pneg %p38
      %s312 = smul.u32 16, %s20
      %p313 = scmp.lt.s32.totalorder %s312, 31
      %s314 = scalar_select %p313, %s312, 31
      %s315 = smul.addr %s314, 4
      %s316 = scalar_lea.vmem %s1, %s315
      %p317 = pneg %p67
      %p318 = pneg %p64
      %p319 = pneg %p88
      %p320 = pneg %p85
      %p321 = pneg %p109
      %p322 = pneg %p106
      %p323 = pneg %p130
      %p324 = pneg %p127
      %p325 = pneg %p151
      %p326 = pneg %p148
      %p327 = pneg %p172
      %p328 = pneg %p169
      %p329 = pneg %p193
      %p330 = pneg %p190
      %p331 = pneg %p214
      %p332 = pneg %p211
      %p333 = pneg %p240
      %p334 = pneg %p237
      %p335 = scmp.lt.s32.totalorder %s20, 1
      %s336 = scalar_select %p335, %s20, 1
      %s337 = smul.addr %s336, 8
      %s338 = scalar_lea.vmem %s9, %s337
      %s339 = smul.u32 16, %s20
      %p340 = scmp.lt.s32.totalorder %s339, 31
      %s341 = scalar_select %p340, %s339, 31
      %s342 = smul.addr %s341, 4
      %s343 = scalar_lea.vmem %s0, %s342
      %s344 = smul.u32 16, %s20
      %s345 = smul.u32 16, %s20
      %p346 = scmp.lt.s32.totalorder %s345, 31
      %s347 = scalar_select %p346, %s345, 31
      %s348 = smul.addr %s347, 4
      %s349 = scalar_lea.vmem %s1, %s348
      %s350 = smul.u32 16, %s20
      %p351 = scmp.lt.s32.totalorder %s20, 1
      %s352 = scalar_select %p351, %s20, 1
      %s353 = smul.addr %s352, 8
      %s354 = scalar_lea.vmem %s9, %s353
      %v356 = vld [vmem:[%s343] sm:$0xf]
      %v357 = vld [vmem:[%s343 + $0x4] sm:$0xf]
      %v358 = vld [vmem:[%s343 + $0x8] sm:$0xf]
      %v359 = vld [vmem:[%s343 + $0xc] sm:$0xf]
      %v360 = vld [vmem:[%s343 + $0x10] sm:$0xf]
      %v361 = vld [vmem:[%s343 + $0x14] sm:$0xf]
      %v362 = vld [vmem:[%s343 + $0x18] sm:$0xf]
      %v363 = vld [vmem:[%s343 + $0x1c] sm:$0xf]
      %v364 = vld [vmem:[%s343 + $0x20] sm:$0xf]
      %v365 = vld [vmem:[%s343 + $0x24] sm:$0xf]
      %v366 = vld [vmem:[%s343 + $0x28] sm:$0xf]
      %v367 = vld [vmem:[%s343 + $0x2c] sm:$0xf]
      %v368 = vld [vmem:[%s343 + $0x30] sm:$0xf]
      %v369 = vld [vmem:[%s343 + $0x34] sm:$0xf]
      %v370 = vld [vmem:[%s343 + $0x38] sm:$0xf]
      %v371 = vld [vmem:[%s343 + $0x3c] sm:$0xf]
      %v372 = vld [vmem:[%s2] sm:$0xff]
      %v373 = vld [vmem:[%s2 + $0x8] sm:$0xff]
      %v374 = vld [vmem:[%s349] sm:$0xf]
      %v375 = vld [vmem:[%s349 + $0x4] sm:$0xf]
      %v376 = vld [vmem:[%s349 + $0x8] sm:$0xf]
      %v377 = vld [vmem:[%s349 + $0xc] sm:$0xf]
      %v378 = vld [vmem:[%s349 + $0x10] sm:$0xf]
      %v379 = vld [vmem:[%s349 + $0x14] sm:$0xf]
      %v380 = vld [vmem:[%s349 + $0x18] sm:$0xf]
      %v381 = vld [vmem:[%s349 + $0x1c] sm:$0xf]
      %v382 = vld [vmem:[%s349 + $0x20] sm:$0xf]
      %v383 = vld [vmem:[%s349 + $0x24] sm:$0xf]
      %v384 = vld [vmem:[%s349 + $0x28] sm:$0xf]
      %v385 = vld [vmem:[%s349 + $0x2c] sm:$0xf]
      %v386 = vld [vmem:[%s349 + $0x30] sm:$0xf]
      %v387 = vld [vmem:[%s349 + $0x34] sm:$0xf]
      %v388 = vld [vmem:[%s349 + $0x38] sm:$0xf]
      %v389 = vld [vmem:[%s349 + $0x3c] sm:$0xf]
      %v390 = vld [vmem:[%s3] sm:$0xff]
      %v407 = vunpack.c.l.b16 %v374
      %v408 = vunpack.c.l.b16 %v375
      %v409 = vunpack.c.l.b16 %v376
      %v410 = vunpack.c.l.b16 %v377
      %v411 = vunpack.c.l.b16 %v378
      %v412 = vunpack.c.l.b16 %v379
      %v413 = vunpack.c.l.b16 %v380
      %v414 = vunpack.c.l.b16 %v381
      %v415 = vunpack.c.l.b16 %v382
      %v416 = vunpack.c.l.b16 %v383
      %v417 = vunpack.c.l.b16 %v384
      %v418 = vunpack.c.l.b16 %v385
      %v419 = vunpack.c.l.b16 %v386
      %v420 = vunpack.c.l.b16 %v387
      %v421 = vunpack.c.l.b16 %v388
      %v422 = vunpack.c.l.b16 %v389
      %v423 = vpack.c.b16 %v408, %v407
      %v424 = vpack.c.b16 %v410, %v409
      %v425 = vpack.c.b16 %v412, %v411
      %v426 = vpack.c.b16 %v414, %v413
      %v427 = vpack.c.b16 %v416, %v415
      %v428 = vpack.c.b16 %v418, %v417
      %v429 = vpack.c.b16 %v420, %v419
      %v430 = vpack.c.b16 %v422, %v421
      %v432 = vunpack.c.l.b16 %v390
      %v433 = vunpack.c.h.b16 %v390
      %v434 = vpack.c.b16 %v432, %v432
      %v435 = vpack.c.b16 %v433, %v433
      %vm436 = vcmask 64512
      %v438 = vsel %vm436, %v423, 0
      %v441 = vsel %vm436, %v424, 0
      %v444 = vsel %vm436, %v425, 0
      %v447 = vsel %vm436, %v426, 0
      %v450 = vsel %vm436, %v427, 0
      %v453 = vsel %vm436, %v428, 0
      %v456 = vsel %vm436, %v429, 0
      %v459 = vsel %vm436, %v430, 0
      %vm461 = vcmask 1043456
      %v463 = vsel %vm461, %v434, 0
      %v466 = vsel %vm461, %v435, 0
      %468 = vmatprep.subr.bf16.mxu0 %v466
      %469 = vmatpush1.bf16.msra.mxu0 %v463
      %470 = vmatprep.subr.bf16.mxu0 0
      %471 = vmatpush1.bf16.msra.mxu0 0
      %472 = vmatprep.subr.bf16.mxu0 0
      %473 = vmatpush1.bf16.msra.mxu0 0
      %474 = vmatprep.subr.bf16.mxu0 0
      %475 = vmatpush1.bf16.msra.mxu0 0
      %476 = vmatprep.subr.bf16.mxu0 0
      %477 = vmatpush1.bf16.msra.mxu0 0
      %478 = vmatprep.subr.bf16.mxu0 0
      %479 = vmatpush1.bf16.msra.mxu0 0
      %480 = vmatprep.subr.bf16.mxu0 0
      %481 = vmatpush1.bf16.msra.mxu0 0
      %482 = vmatprep.subr.bf16.mxu0 0
      %483 = vmatpush1.bf16.msra.mxu0 0
      %484 = vmatprep.subr.bf16.mxu0 0
      %485 = vmatpush1.bf16.msra.mxu0 0
      %486 = vmatprep.subr.bf16.mxu0 0
      %487 = vmatpush1.bf16.msra.mxu0 0
      %488 = vmatprep.subr.bf16.mxu0 0
      %489 = vmatpush1.bf16.msra.mxu0 0
      %490 = vmatprep.subr.bf16.mxu0 0
      %491 = vmatpush1.bf16.msra.mxu0 0
      %492 = vmatprep.subr.bf16.mxu0 0
      %493 = vmatpush1.bf16.msra.mxu0 0
      %494 = vmatprep.subr.bf16.mxu0 0
      %495 = vmatpush1.bf16.msra.mxu0 0
      %496 = vmatprep.subr.bf16.mxu0 0
      %497 = vmatpush1.bf16.msra.mxu0 0
      %498 = vmatprep.subr.bf16.mxu0 0
      %499 = vmatpush1.bf16.msra.mxu0 0
      %500 = vmatprep.mubr.bf16.mxu0 0
      %501 = vmatmul.mubr.bf16.gmra.mrb[0].mxu0 %v438
      %v502 = vpop.f32.mrb[0].mxu0
      %v503 = vadd.f32 0.0, %v502
      %v504 = vpop.f32.mrb[0].mxu0
      %v505 = vadd.f32 0.0, %v504
      %v506 = vpop.f32.mrb[0].mxu0
      %v507 = vadd.f32 0.0, %v506
      %v508 = vpop.f32.mrb[0].mxu0
      %v509 = vadd.f32 0.0, %v508
      %510 = vmatprep.mubr.bf16.mxu0 0
      %511 = vmatmul.mubr.bf16.gmra.mrb[0].mxu0 %v441
      %v512 = vpop.f32.mrb[0].mxu0
      %v513 = vadd.f32 0.0, %v512
      %v514 = vpop.f32.mrb[0].mxu0
      %v515 = vadd.f32 0.0, %v514
      %v516 = vpop.f32.mrb[0].mxu0
      %v517 = vadd.f32 0.0, %v516
      %v518 = vpop.f32.mrb[0].mxu0
      %v519 = vadd.f32 0.0, %v518
      %520 = vmatprep.mubr.bf16.mxu0 0
      %521 = vmatmul.mubr.bf16.gmra.mrb[0].mxu0 %v444
      %v522 = vpop.f32.mrb[0].mxu0
      %v523 = vadd.f32 0.0, %v522
      %v524 = vpop.f32.mrb[0].mxu0
      %v525 = vadd.f32 0.0, %v524
      %v526 = vpop.f32.mrb[0].mxu0
      %v527 = vadd.f32 0.0, %v526
      %v528 = vpop.f32.mrb[0].mxu0
      %v529 = vadd.f32 0.0, %v528
      %530 = vmatprep.mubr.bf16.mxu0 0
      %531 = vmatmul.mubr.bf16.gmra.mrb[0].mxu0 %v447
      %v532 = vpop.f32.mrb[0].mxu0
      %v533 = vadd.f32 0.0, %v532
      %v534 = vpop.f32.mrb[0].mxu0
      %v535 = vadd.f32 0.0, %v534
      %v536 = vpop.f32.mrb[0].mxu0
      %v537 = vadd.f32 0.0, %v536
      %v538 = vpop.f32.mrb[0].mxu0
      %v539 = vadd.f32 0.0, %v538
      %540 = vmatprep.mubr.bf16.mxu0 0
      %541 = vmatmul.mubr.bf16.gmra.mrb[0].mxu0 %v450
      %v542 = vpop.f32.mrb[0].mxu0
      %v543 = vadd.f32 0.0, %v542
      %v544 = vpop.f32.mrb[0].mxu0
      %v545 = vadd.f32 0.0, %v544
      %v546 = vpop.f32.mrb[0].mxu0
      %v547 = vadd.f32 0.0, %v546
      %v548 = vpop.f32.mrb[0].mxu0
      %v549 = vadd.f32 0.0, %v548
      %550 = vmatprep.mubr.bf16.mxu0 0
      %551 = vmatmul.mubr.bf16.gmra.mrb[0].mxu0 %v453
      %v552 = vpop.f32.mrb[0].mxu0
      %v553 = vadd.f32 0.0, %v552
      %v554 = vpop.f32.mrb[0].mxu0
      %v555 = vadd.f32 0.0, %v554
      %v556 = vpop.f32.mrb[0].mxu0
      %v557 = vadd.f32 0.0, %v556
      %v558 = vpop.f32.mrb[0].mxu0
      %v559 = vadd.f32 0.0, %v558
      %560 = vmatprep.mubr.bf16.mxu0 0
      %561 = vmatmul.mubr.bf16.gmra.mrb[0].mxu0 %v456
      %v562 = vpop.f32.mrb[0].mxu0
      %v563 = vadd.f32 0.0, %v562
      %v564 = vpop.f32.mrb[0].mxu0
      %v565 = vadd.f32 0.0, %v564
      %v566 = vpop.f32.mrb[0].mxu0
      %v567 = vadd.f32 0.0, %v566
      %v568 = vpop.f32.mrb[0].mxu0
      %v569 = vadd.f32 0.0, %v568
      %570 = vmatprep.mubr.bf16.mxu0 0
      %571 = vmatmul.mubr.bf16.gmra.mrb[0].mxu0 %v459
      %v572 = vpop.f32.mrb[0].mxu0
      %v573 = vadd.f32 0.0, %v572
      %v574 = vpop.f32.mrb[0].mxu0
      %v575 = vadd.f32 0.0, %v574
      %v576 = vpop.f32.mrb[0].mxu0
      %v577 = vadd.f32 0.0, %v576
      %v578 = vpop.f32.mrb[0].mxu0
      %v579 = vadd.f32 0.0, %v578
      %580 = vdwg.mxu0
      %v597 = vunpack.c.l.b16 %v356
      %v598 = vunpack.c.l.b16 %v357
      %v599 = vunpack.c.l.b16 %v358
      %v600 = vunpack.c.l.b16 %v359
      %v601 = vunpack.c.l.b16 %v360
      %v602 = vunpack.c.l.b16 %v361
      %v603 = vunpack.c.l.b16 %v362
      %v604 = vunpack.c.l.b16 %v363
      %v605 = vunpack.c.l.b16 %v364
      %v606 = vunpack.c.l.b16 %v365
      %v607 = vunpack.c.l.b16 %v366
      %v608 = vunpack.c.l.b16 %v367
      %v609 = vunpack.c.l.b16 %v368
      %v610 = vunpack.c.l.b16 %v369
      %v611 = vunpack.c.l.b16 %v370
      %v612 = vunpack.c.l.b16 %v371
      %v613 = vpack.c.b16 %v598, %v597
      %v614 = vpack.c.b16 %v600, %v599
      %v615 = vpack.c.b16 %v602, %v601
      %v616 = vpack.c.b16 %v604, %v603
      %v617 = vpack.c.b16 %v606, %v605
      %v618 = vpack.c.b16 %v608, %v607
      %v619 = vpack.c.b16 %v610, %v609
      %v620 = vpack.c.b16 %v612, %v611
      %v623 = vunpack.c.l.b16 %v372
      %v624 = vunpack.c.h.b16 %v372
      %v625 = vunpack.c.l.b16 %v373
      %v626 = vunpack.c.h.b16 %v373
      %v627 = vpack.c.b16 %v625, %v623
      %v628 = vpack.c.b16 %v626, %v624
      %vm631 = vcmask 130048
      %v633 = vsel %vm631, %v613, 0
      %v636 = vsel %vm631, %v614, 0
      %v639 = vsel %vm631, %v615, 0
      %v642 = vsel %vm631, %v616, 0
      %v645 = vsel %vm631, %v617, 0
      %v648 = vsel %vm631, %v618, 0
      %v651 = vsel %vm631, %v619, 0
      %v654 = vsel %vm631, %v620, 0
      %656 = vmatprep.subr.bf16.mxu0 %v628
      %657 = vmatpush1.bf16.msra.mxu0 %v627
      %658 = vmatprep.subr.bf16.mxu0 0
      %659 = vmatpush1.bf16.msra.mxu0 0
      %660 = vmatprep.subr.bf16.mxu0 0
      %661 = vmatpush1.bf16.msra.mxu0 0
      %662 = vmatprep.subr.bf16.mxu0 0
      %663 = vmatpush1.bf16.msra.mxu0 0
      %664 = vmatprep.subr.bf16.mxu0 0
      %665 = vmatpush1.bf16.msra.mxu0 0
      %666 = vmatprep.subr.bf16.mxu0 0
      %667 = vmatpush1.bf16.msra.mxu0 0
      %668 = vmatprep.subr.bf16.mxu0 0
      %669 = vmatpush1.bf16.msra.mxu0 0
      %670 = vmatprep.subr.bf16.mxu0 0
      %671 = vmatpush1.bf16.msra.mxu0 0
      %672 = vmatprep.subr.bf16.mxu0 0
      %673 = vmatpush1.bf16.msra.mxu0 0
      %674 = vmatprep.subr.bf16.mxu0 0
      %675 = vmatpush1.bf16.msra.mxu0 0
      %676 = vmatprep.subr.bf16.mxu0 0
      %677 = vmatpush1.bf16.msra.mxu0 0
      %678 = vmatprep.subr.bf16.mxu0 0
      %679 = vmatpush1.bf16.msra.mxu0 0
      %680 = vmatprep.subr.bf16.mxu0 0
      %681 = vmatpush1.bf16.msra.mxu0 0
      %682 = vmatprep.subr.bf16.mxu0 0
      %683 = vmatpush1.bf16.msra.mxu0 0
      %684 = vmatprep.subr.bf16.mxu0 0
      %685 = vmatpush1.bf16.msra.mxu0 0
      %686 = vmatprep.subr.bf16.mxu0 0
      %687 = vmatpush1.bf16.msra.mxu0 0
      %688 = vmatprep.mubr.bf16.mxu0 0
      %689 = vmatmul.mubr.bf16.gmra.mrb[0].mxu0 %v633
      %v690 = vpop.f32.mrb[0].mxu0
      %v691 = vadd.f32 %v503, %v690
      %v692 = vpop.f32.mrb[0].mxu0
      %v693 = vadd.f32 %v505, %v692
      %v694 = vpop.f32.mrb[0].mxu0
      %v695 = vadd.f32 %v507, %v694
      %v696 = vpop.f32.mrb[0].mxu0
      %v697 = vadd.f32 %v509, %v696
      %698 = vmatprep.mubr.bf16.mxu0 0
      %699 = vmatmul.mubr.bf16.gmra.mrb[0].mxu0 %v636
      %v700 = vpop.f32.mrb[0].mxu0
      %v701 = vadd.f32 %v513, %v700
      %v702 = vpop.f32.mrb[0].mxu0
      %v703 = vadd.f32 %v515, %v702
      %v704 = vpop.f32.mrb[0].mxu0
      %v705 = vadd.f32 %v517, %v704
      %v706 = vpop.f32.mrb[0].mxu0
      %v707 = vadd.f32 %v519, %v706
      %708 = vmatprep.mubr.bf16.mxu0 0
      %709 = vmatmul.mubr.bf16.gmra.mrb[0].mxu0 %v639
      %v710 = vpop.f32.mrb[0].mxu0
      %v711 = vadd.f32 %v523, %v710
      %v712 = vpop.f32.mrb[0].mxu0
      %v713 = vadd.f32 %v525, %v712
      %v714 = vpop.f32.mrb[0].mxu0
      %v715 = vadd.f32 %v527, %v714
      %v716 = vpop.f32.mrb[0].mxu0
      %v717 = vadd.f32 %v529, %v716
      %718 = vmatprep.mubr.bf16.mxu0 0
      %719 = vmatmul.mubr.bf16.gmra.mrb[0].mxu0 %v642
      %v720 = vpop.f32.mrb[0].mxu0
      %v721 = vadd.f32 %v533, %v720
      %v722 = vpop.f32.mrb[0].mxu0
      %v723 = vadd.f32 %v535, %v722
      %v724 = vpop.f32.mrb[0].mxu0
      %v725 = vadd.f32 %v537, %v724
      %v726 = vpop.f32.mrb[0].mxu0
      %v727 = vadd.f32 %v539, %v726
      %728 = vmatprep.mubr.bf16.mxu0 0
      %729 = vmatmul.mubr.bf16.gmra.mrb[0].mxu0 %v645
      %v730 = vpop.f32.mrb[0].mxu0
      %v731 = vadd.f32 %v543, %v730
      %v732 = vpop.f32.mrb[0].mxu0
      %v733 = vadd.f32 %v545, %v732
      %v734 = vpop.f32.mrb[0].mxu0
      %v735 = vadd.f32 %v547, %v734
      %v736 = vpop.f32.mrb[0].mxu0
      %v737 = vadd.f32 %v549, %v736
      %738 = vmatprep.mubr.bf16.mxu0 0
      %739 = vmatmul.mubr.bf16.gmra.mrb[0].mxu0 %v648
      %v740 = vpop.f32.mrb[0].mxu0
      %v741 = vadd.f32 %v553, %v740
      %v742 = vpop.f32.mrb[0].mxu0
      %v743 = vadd.f32 %v555, %v742
      %v744 = vpop.f32.mrb[0].mxu0
      %v745 = vadd.f32 %v557, %v744
      %v746 = vpop.f32.mrb[0].mxu0
      %v747 = vadd.f32 %v559, %v746
      %748 = vmatprep.mubr.bf16.mxu0 0
      %749 = vmatmul.mubr.bf16.gmra.mrb[0].mxu0 %v651
      %v750 = vpop.f32.mrb[0].mxu0
      %v751 = vadd.f32 %v563, %v750
      %v752 = vpop.f32.mrb[0].mxu0
      %v753 = vadd.f32 %v565, %v752
      %v754 = vpop.f32.mrb[0].mxu0
      %v755 = vadd.f32 %v567, %v754
      %v756 = vpop.f32.mrb[0].mxu0
      %v757 = vadd.f32 %v569, %v756
      %758 = vmatprep.mubr.bf16.mxu0 0
      %759 = vmatmul.mubr.bf16.gmra.mrb[0].mxu0 %v654
      %v760 = vpop.f32.mrb[0].mxu0
      %v761 = vadd.f32 %v573, %v760
      %v762 = vpop.f32.mrb[0].mxu0
      %v763 = vadd.f32 %v575, %v762
      %v764 = vpop.f32.mrb[0].mxu0
      %v765 = vadd.f32 %v577, %v764
      %v766 = vpop.f32.mrb[0].mxu0
      %v767 = vadd.f32 %v579, %v766
      %768 = vdwg.mxu0
      %v769 = vld [vmem:[%s4] sm:$0x3]
      %v771 = vlaneseq
      %v772 = vshrl.u32 %v771, 7
      %v773 = vsub.s32 0, %v772
      %v774 = vrot.slane %v769, %v773
      %v775 = vlaneseq
      %v776 = vshrl.u32 %v775, 7
      %v777 = vsub.s32 1, %v776
      %v778 = vrot.slane %v769, %v777
      %v781 = vadd.f32 %v691, %v774
      %v782 = vadd.f32 %v693, %v778
      %v783 = vadd.f32 %v695, %v774
      %v784 = vadd.f32 %v697, %v778
      %v785 = vadd.f32 %v701, %v774
      %v786 = vadd.f32 %v703, %v778
      %v787 = vadd.f32 %v705, %v774
      %v788 = vadd.f32 %v707, %v778
      %v789 = vadd.f32 %v711, %v774
      %v790 = vadd.f32 %v713, %v778
      %v791 = vadd.f32 %v715, %v774
      %v792 = vadd.f32 %v717, %v778
      %v793 = vadd.f32 %v721, %v774
      %v794 = vadd.f32 %v723, %v778
      %v795 = vadd.f32 %v725, %v774
      %v796 = vadd.f32 %v727, %v778
      %v797 = vadd.f32 %v731, %v774
      %v798 = vadd.f32 %v733, %v778
      %v799 = vadd.f32 %v735, %v774
      %v800 = vadd.f32 %v737, %v778
      %v801 = vadd.f32 %v741, %v774
      %v802 = vadd.f32 %v743, %v778
      %v803 = vadd.f32 %v745, %v774
      %v804 = vadd.f32 %v747, %v778
      %v805 = vadd.f32 %v751, %v774
      %v806 = vadd.f32 %v753, %v778
      %v807 = vadd.f32 %v755, %v774
      %v808 = vadd.f32 %v757, %v778
      %v809 = vadd.f32 %v761, %v774
      %v810 = vadd.f32 %v763, %v778
      %v811 = vadd.f32 %v765, %v774
      %v812 = vadd.f32 %v767, %v778
      %v813 = vmax.f32 %v781, 0.0
      %v814 = vmax.f32 %v782, 0.0
      %v815 = vmax.f32 %v783, 0.0
      %v816 = vmax.f32 %v784, 0.0
      %v817 = vmax.f32 %v785, 0.0
      %v818 = vmax.f32 %v786, 0.0
      %v819 = vmax.f32 %v787, 0.0
      %v820 = vmax.f32 %v788, 0.0
      %v821 = vmax.f32 %v789, 0.0
      %v822 = vmax.f32 %v790, 0.0
      %v823 = vmax.f32 %v791, 0.0
      %v824 = vmax.f32 %v792, 0.0
      %v825 = vmax.f32 %v793, 0.0
      %v826 = vmax.f32 %v794, 0.0
      %v827 = vmax.f32 %v795, 0.0
      %v828 = vmax.f32 %v796, 0.0
      %v829 = vmax.f32 %v797, 0.0
      %v830 = vmax.f32 %v798, 0.0
      %v831 = vmax.f32 %v799, 0.0
      %v832 = vmax.f32 %v800, 0.0
      %v833 = vmax.f32 %v801, 0.0
      %v834 = vmax.f32 %v802, 0.0
      %v835 = vmax.f32 %v803, 0.0
      %v836 = vmax.f32 %v804, 0.0
      %v837 = vmax.f32 %v805, 0.0
      %v838 = vmax.f32 %v806, 0.0
      %v839 = vmax.f32 %v807, 0.0
      %v840 = vmax.f32 %v808, 0.0
      %v841 = vmax.f32 %v809, 0.0
      %v842 = vmax.f32 %v810, 0.0
      %v843 = vmax.f32 %v811, 0.0
      %v844 = vmax.f32 %v812, 0.0
      %v845 = vpack.c.bf16 %v815, %v813
      %v846 = vpack.c.bf16 %v816, %v814
      %v847 = vpack.c.bf16 %v819, %v817
      %v848 = vpack.c.bf16 %v820, %v818
      %v849 = vpack.c.bf16 %v823, %v821
      %v850 = vpack.c.bf16 %v824, %v822
      %v851 = vpack.c.bf16 %v827, %v825
      %v852 = vpack.c.bf16 %v828, %v826
      %v853 = vpack.c.bf16 %v831, %v829
      %v854 = vpack.c.bf16 %v832, %v830
      %v855 = vpack.c.bf16 %v835, %v833
      %v856 = vpack.c.bf16 %v836, %v834
      %v857 = vpack.c.bf16 %v839, %v837
      %v858 = vpack.c.bf16 %v840, %v838
      %v859 = vpack.c.bf16 %v843, %v841
      %v860 = vpack.c.bf16 %v844, %v842
      %v861 = vld [vmem:[%s5] sm:$0xff]
      %v862 = vld [vmem:[%s5 + $0x8] sm:$0xff]
      %v863 = vld [vmem:[%s5 + $0x10] sm:$0xff]
      %v864 = vld [vmem:[%s5 + $0x18] sm:$0xff]
      %v865 = vld [vmem:[%s5 + $0x20] sm:$0xff]
      %v866 = vld [vmem:[%s5 + $0x28] sm:$0xff]
      %v867 = vld [vmem:[%s5 + $0x30] sm:$0xff]
      %v868 = vld [vmem:[%s5 + $0x38] sm:$0xff]
      %v869 = vld [vmem:[%s5 + $0x40] sm:$0xff]
      %v870 = vld [vmem:[%s5 + $0x48] sm:$0xff]
      %v871 = vld [vmem:[%s5 + $0x50] sm:$0xff]
      %v872 = vld [vmem:[%s5 + $0x58] sm:$0xff]
      %v873 = vld [vmem:[%s5 + $0x60] sm:$0xff]
      %v874 = vld [vmem:[%s5 + $0x68] sm:$0xff]
      %v875 = vld [vmem:[%s5 + $0x70] sm:$0xff]
      %v876 = vld [vmem:[%s5 + $0x78] sm:$0xff]
      %v877 = vld [vmem:[%s5 + $0x80] sm:$0xff]
      %v878 = vld [vmem:[%s5 + $0x88] sm:$0xff]
      %v879 = vld [vmem:[%s5 + $0x90] sm:$0xff]
      %v880 = vld [vmem:[%s5 + $0x98] sm:$0xff]
      %v881 = vld [vmem:[%s5 + $0xa0] sm:$0xff]
      %v882 = vld [vmem:[%s5 + $0xa8] sm:$0xff]
      %v883 = vld [vmem:[%s5 + $0xb0] sm:$0xff]
      %v884 = vld [vmem:[%s5 + $0xb8] sm:$0xff]
      %v885 = vld [vmem:[%s5 + $0xc0] sm:$0xff]
      %v886 = vld [vmem:[%s5 + $0xc8] sm:$0xff]
      %v887 = vld [vmem:[%s5 + $0xd0] sm:$0xff]
      %v888 = vld [vmem:[%s5 + $0xd8] sm:$0xff]
      %v889 = vld [vmem:[%s5 + $0xe0] sm:$0xff]
      %v890 = vld [vmem:[%s5 + $0xe8] sm:$0xff]
      %v891 = vld [vmem:[%s5 + $0xf0] sm:$0xff]
      %v892 = vld [vmem:[%s5 + $0xf8] sm:$0xff]
      %v893 = vld [vmem:[%s6] sm:$0x3]
      %v895 = vlaneseq
      %v896 = vshrl.u32 %v895, 7
      %v897 = vsub.s32 0, %v896
      %v898 = vrot.slane %v893, %v897
      %v899 = vlaneseq
      %v900 = vshrl.u32 %v899, 7
      %v901 = vsub.s32 1, %v900
      %v902 = vrot.slane %v893, %v901
      %v937 = vunpack.c.l.b16 %v861
      %v938 = vunpack.c.h.b16 %v861
      %v939 = vunpack.c.l.b16 %v862
      %v940 = vunpack.c.h.b16 %v862
      %v941 = vunpack.c.l.b16 %v863
      %v942 = vunpack.c.h.b16 %v863
      %v943 = vunpack.c.l.b16 %v864
      %v944 = vunpack.c.h.b16 %v864
      %v945 = vunpack.c.l.b16 %v865
      %v946 = vunpack.c.h.b16 %v865
      %v947 = vunpack.c.l.b16 %v866
      %v948 = vunpack.c.h.b16 %v866
      %v949 = vunpack.c.l.b16 %v867
      %v950 = vunpack.c.h.b16 %v867
      %v951 = vunpack.c.l.b16 %v868
      %v952 = vunpack.c.h.b16 %v868
      %v953 = vunpack.c.l.b16 %v869
      %v954 = vunpack.c.h.b16 %v869
      %v955 = vunpack.c.l.b16 %v870
      %v956 = vunpack.c.h.b16 %v870
      %v957 = vunpack.c.l.b16 %v871
      %v958 = vunpack.c.h.b16 %v871
      %v959 = vunpack.c.l.b16 %v872
      %v960 = vunpack.c.h.b16 %v872
      %v961 = vunpack.c.l.b16 %v873
      %v962 = vunpack.c.h.b16 %v873
      %v963 = vunpack.c.l.b16 %v874
      %v964 = vunpack.c.h.b16 %v874
      %v965 = vunpack.c.l.b16 %v875
      %v966 = vunpack.c.h.b16 %v875
      %v967 = vunpack.c.l.b16 %v876
      %v968 = vunpack.c.h.b16 %v876
      %v969 = vunpack.c.l.b16 %v877
      %v970 = vunpack.c.h.b16 %v877
      %v971 = vunpack.c.l.b16 %v878
      %v972 = vunpack.c.h.b16 %v878
      %v973 = vunpack.c.l.b16 %v879
      %v974 = vunpack.c.h.b16 %v879
      %v975 = vunpack.c.l.b16 %v880
      %v976 = vunpack.c.h.b16 %v880
      %v977 = vunpack.c.l.b16 %v881
      %v978 = vunpack.c.h.b16 %v881
      %v979 = vunpack.c.l.b16 %v882
      %v980 = vunpack.c.h.b16 %v882
      %v981 = vunpack.c.l.b16 %v883
      %v982 = vunpack.c.h.b16 %v883
      %v983 = vunpack.c.l.b16 %v884
      %v984 = vunpack.c.h.b16 %v884
      %v985 = vunpack.c.l.b16 %v885
      %v986 = vunpack.c.h.b16 %v885
      %v987 = vunpack.c.l.b16 %v886
      %v988 = vunpack.c.h.b16 %v886
      %v989 = vunpack.c.l.b16 %v887
      %v990 = vunpack.c.h.b16 %v887
      %v991 = vunpack.c.l.b16 %v888
      %v992 = vunpack.c.h.b16 %v888
      %v993 = vunpack.c.l.b16 %v889
      %v994 = vunpack.c.h.b16 %v889
      %v995 = vunpack.c.l.b16 %v890
      %v996 = vunpack.c.h.b16 %v890
      %v997 = vunpack.c.l.b16 %v891
      %v998 = vunpack.c.h.b16 %v891
      %v999 = vunpack.c.l.b16 %v892
      %v1000 = vunpack.c.h.b16 %v892
      %v1001 = vpack.c.b16 %v939, %v937
      %v1002 = vpack.c.b16 %v940, %v938
      %v1003 = vpack.c.b16 %v943, %v941
      %v1004 = vpack.c.b16 %v944, %v942
      %v1005 = vpack.c.b16 %v947, %v945
      %v1006 = vpack.c.b16 %v948, %v946
      %v1007 = vpack.c.b16 %v951, %v949
      %v1008 = vpack.c.b16 %v952, %v950
      %v1009 = vpack.c.b16 %v955, %v953
      %v1010 = vpack.c.b16 %v956, %v954
      %v1011 = vpack.c.b16 %v959, %v957
      %v1012 = vpack.c.b16 %v960, %v958
      %v1013 = vpack.c.b16 %v963, %v961
      %v1014 = vpack.c.b16 %v964, %v962
      %v1015 = vpack.c.b16 %v967, %v965
      %v1016 = vpack.c.b16 %v968, %v966
      %v1017 = vpack.c.b16 %v971, %v969
      %v1018 = vpack.c.b16 %v972, %v970
      %v1019 = vpack.c.b16 %v975, %v973
      %v1020 = vpack.c.b16 %v976, %v974
      %v1021 = vpack.c.b16 %v979, %v977
      %v1022 = vpack.c.b16 %v980, %v978
      %v1023 = vpack.c.b16 %v983, %v981
      %v1024 = vpack.c.b16 %v984, %v982
      %v1025 = vpack.c.b16 %v987, %v985
      %v1026 = vpack.c.b16 %v988, %v986
      %v1027 = vpack.c.b16 %v991, %v989
      %v1028 = vpack.c.b16 %v992, %v990
      %v1029 = vpack.c.b16 %v995, %v993
      %v1030 = vpack.c.b16 %v996, %v994
      %v1031 = vpack.c.b16 %v999, %v997
      %v1032 = vpack.c.b16 %v1000, %v998
      %1065 = vmatprep.subr.bf16.mxu0 %v1002
      %1066 = vmatpush1.bf16.msra.mxu0 %v1001
      %1067 = vmatprep.subr.bf16.mxu0 %v1004
      %1068 = vmatpush1.bf16.msra.mxu0 %v1003
      %1069 = vmatprep.subr.bf16.mxu0 %v1006
      %1070 = vmatpush1.bf16.msra.mxu0 %v1005
      %1071 = vmatprep.subr.bf16.mxu0 %v1008
      %1072 = vmatpush1.bf16.msra.mxu0 %v1007
      %1073 = vmatprep.subr.bf16.mxu0 %v1010
      %1074 = vmatpush1.bf16.msra.mxu0 %v1009
      %1075 = vmatprep.subr.bf16.mxu0 %v1012
      %1076 = vmatpush1.bf16.msra.mxu0 %v1011
      %1077 = vmatprep.subr.bf16.mxu0 %v1014
      %1078 = vmatpush1.bf16.msra.mxu0 %v1013
      %1079 = vmatprep.subr.bf16.mxu0 %v1016
      %1080 = vmatpush1.bf16.msra.mxu0 %v1015
      %1081 = vmatprep.subr.bf16.mxu0 %v1018
      %1082 = vmatpush1.bf16.msra.mxu0 %v1017
      %1083 = vmatprep.subr.bf16.mxu0 %v1020
      %1084 = vmatpush1.bf16.msra.mxu0 %v1019
      %1085 = vmatprep.subr.bf16.mxu0 %v1022
      %1086 = vmatpush1.bf16.msra.mxu0 %v1021
      %1087 = vmatprep.subr.bf16.mxu0 %v1024
      %1088 = vmatpush1.bf16.msra.mxu0 %v1023
      %1089 = vmatprep.subr.bf16.mxu0 %v1026
      %1090 = vmatpush1.bf16.msra.mxu0 %v1025
      %1091 = vmatprep.subr.bf16.mxu0 %v1028
      %1092 = vmatpush1.bf16.msra.mxu0 %v1027
      %1093 = vmatprep.subr.bf16.mxu0 %v1030
      %1094 = vmatpush1.bf16.msra.mxu0 %v1029
      %1095 = vmatprep.subr.bf16.mxu0 %v1032
      %1096 = vmatpush1.bf16.msra.mxu0 %v1031
      %1097 = vmatprep.mubr.bf16.mxu0 %v846
      %1098 = vmatmul.mubr.bf16.gmra.mrb[0].mxu0 %v845
      %v1099 = vpop.f32.mrb[0].mxu0
      %v1100 = vadd.f32 %v898, %v1099
      %v1101 = vpop.f32.mrb[0].mxu0
      %v1102 = vadd.f32 %v902, %v1101
      %v1103 = vpop.f32.mrb[0].mxu0
      %v1104 = vadd.f32 %v898, %v1103
      %v1105 = vpop.f32.mrb[0].mxu0
      %v1106 = vadd.f32 %v902, %v1105
      %1107 = vmatprep.mubr.bf16.mxu0 %v848
      %1108 = vmatmul.mubr.bf16.gmra.mrb[0].mxu0 %v847
      %v1109 = vpop.f32.mrb[0].mxu0
      %v1110 = vadd.f32 %v898, %v1109
      %v1111 = vpop.f32.mrb[0].mxu0
      %v1112 = vadd.f32 %v902, %v1111
      %v1113 = vpop.f32.mrb[0].mxu0
      %v1114 = vadd.f32 %v898, %v1113
      %v1115 = vpop.f32.mrb[0].mxu0
      %v1116 = vadd.f32 %v902, %v1115
      %1117 = vmatprep.mubr.bf16.mxu0 %v850
      %1118 = vmatmul.mubr.bf16.gmra.mrb[0].mxu0 %v849
      %v1119 = vpop.f32.mrb[0].mxu0
      %v1120 = vadd.f32 %v898, %v1119
      %v1121 = vpop.f32.mrb[0].mxu0
      %v1122 = vadd.f32 %v902, %v1121
      %v1123 = vpop.f32.mrb[0].mxu0
      %v1124 = vadd.f32 %v898, %v1123
      %v1125 = vpop.f32.mrb[0].mxu0
      %v1126 = vadd.f32 %v902, %v1125
      %1127 = vmatprep.mubr.bf16.mxu0 %v852
      %1128 = vmatmul.mubr.bf16.gmra.mrb[0].mxu0 %v851
      %v1129 = vpop.f32.mrb[0].mxu0
      %v1130 = vadd.f32 %v898, %v1129
      %v1131 = vpop.f32.mrb[0].mxu0
      %v1132 = vadd.f32 %v902, %v1131
      %v1133 = vpop.f32.mrb[0].mxu0
      %v1134 = vadd.f32 %v898, %v1133
      %v1135 = vpop.f32.mrb[0].mxu0
      %v1136 = vadd.f32 %v902, %v1135
      %1137 = vmatprep.mubr.bf16.mxu0 %v854
      %1138 = vmatmul.mubr.bf16.gmra.mrb[0].mxu0 %v853
      %v1139 = vpop.f32.mrb[0].mxu0
      %v1140 = vadd.f32 %v898, %v1139
      %v1141 = vpop.f32.mrb[0].mxu0
      %v1142 = vadd.f32 %v902, %v1141
      %v1143 = vpop.f32.mrb[0].mxu0
      %v1144 = vadd.f32 %v898, %v1143
      %v1145 = vpop.f32.mrb[0].mxu0
      %v1146 = vadd.f32 %v902, %v1145
      %1147 = vmatprep.mubr.bf16.mxu0 %v856
      %1148 = vmatmul.mubr.bf16.gmra.mrb[0].mxu0 %v855
      %v1149 = vpop.f32.mrb[0].mxu0
      %v1150 = vadd.f32 %v898, %v1149
      %v1151 = vpop.f32.mrb[0].mxu0
      %v1152 = vadd.f32 %v902, %v1151
      %v1153 = vpop.f32.mrb[0].mxu0
      %v1154 = vadd.f32 %v898, %v1153
      %v1155 = vpop.f32.mrb[0].mxu0
      %v1156 = vadd.f32 %v902, %v1155
      %1157 = vmatprep.mubr.bf16.mxu0 %v858
      %1158 = vmatmul.mubr.bf16.gmra.mrb[0].mxu0 %v857
      %v1159 = vpop.f32.mrb[0].mxu0
      %v1160 = vadd.f32 %v898, %v1159
      %v1161 = vpop.f32.mrb[0].mxu0
      %v1162 = vadd.f32 %v902, %v1161
      %v1163 = vpop.f32.mrb[0].mxu0
      %v1164 = vadd.f32 %v898, %v1163
      %v1165 = vpop.f32.mrb[0].mxu0
      %v1166 = vadd.f32 %v902, %v1165
      %1167 = vmatprep.mubr.bf16.mxu0 %v860
      %1168 = vmatmul.mubr.bf16.gmra.mrb[0].mxu0 %v859
      %v1169 = vpop.f32.mrb[0].mxu0
      %v1170 = vadd.f32 %v898, %v1169
      %v1171 = vpop.f32.mrb[0].mxu0
      %v1172 = vadd.f32 %v902, %v1171
      %v1173 = vpop.f32.mrb[0].mxu0
      %v1174 = vadd.f32 %v898, %v1173
      %v1175 = vpop.f32.mrb[0].mxu0
      %v1176 = vadd.f32 %v902, %v1175
      %1177 = vdwg.mxu0
      %v1178 = vmax.f32 %v1100, 0.0
      %v1179 = vmax.f32 %v1102, 0.0
      %v1180 = vmax.f32 %v1104, 0.0
      %v1181 = vmax.f32 %v1106, 0.0
      %v1182 = vmax.f32 %v1110, 0.0
      %v1183 = vmax.f32 %v1112, 0.0
      %v1184 = vmax.f32 %v1114, 0.0
      %v1185 = vmax.f32 %v1116, 0.0
      %v1186 = vmax.f32 %v1120, 0.0
      %v1187 = vmax.f32 %v1122, 0.0
      %v1188 = vmax.f32 %v1124, 0.0
      %v1189 = vmax.f32 %v1126, 0.0
      %v1190 = vmax.f32 %v1130, 0.0
      %v1191 = vmax.f32 %v1132, 0.0
      %v1192 = vmax.f32 %v1134, 0.0
      %v1193 = vmax.f32 %v1136, 0.0
      %v1194 = vmax.f32 %v1140, 0.0
      %v1195 = vmax.f32 %v1142, 0.0
      %v1196 = vmax.f32 %v1144, 0.0
      %v1197 = vmax.f32 %v1146, 0.0
      %v1198 = vmax.f32 %v1150, 0.0
      %v1199 = vmax.f32 %v1152, 0.0
      %v1200 = vmax.f32 %v1154, 0.0
      %v1201 = vmax.f32 %v1156, 0.0
      %v1202 = vmax.f32 %v1160, 0.0
      %v1203 = vmax.f32 %v1162, 0.0
      %v1204 = vmax.f32 %v1164, 0.0
      %v1205 = vmax.f32 %v1166, 0.0
      %v1206 = vmax.f32 %v1170, 0.0
      %v1207 = vmax.f32 %v1172, 0.0
      %v1208 = vmax.f32 %v1174, 0.0
      %v1209 = vmax.f32 %v1176, 0.0
      %v1210 = vpack.c.bf16 %v1180, %v1178
      %v1211 = vpack.c.bf16 %v1181, %v1179
      %v1212 = vpack.c.bf16 %v1184, %v1182
      %v1213 = vpack.c.bf16 %v1185, %v1183
      %v1214 = vpack.c.bf16 %v1188, %v1186
      %v1215 = vpack.c.bf16 %v1189, %v1187
      %v1216 = vpack.c.bf16 %v1192, %v1190
      %v1217 = vpack.c.bf16 %v1193, %v1191
      %v1218 = vpack.c.bf16 %v1196, %v1194
      %v1219 = vpack.c.bf16 %v1197, %v1195
      %v1220 = vpack.c.bf16 %v1200, %v1198
      %v1221 = vpack.c.bf16 %v1201, %v1199
      %v1222 = vpack.c.bf16 %v1204, %v1202
      %v1223 = vpack.c.bf16 %v1205, %v1203
      %v1224 = vpack.c.bf16 %v1208, %v1206
      %v1225 = vpack.c.bf16 %v1209, %v1207
      %v1226 = vld [vmem:[%s7] sm:$0xf]
      %v1227 = vld [vmem:[%s7 + $0x4] sm:$0xf]
      %v1228 = vld [vmem:[%s7 + $0x8] sm:$0xf]
      %v1229 = vld [vmem:[%s7 + $0xc] sm:$0xf]
      %v1230 = vld [vmem:[%s7 + $0x10] sm:$0xf]
      %v1231 = vld [vmem:[%s7 + $0x14] sm:$0xf]
      %v1232 = vld [vmem:[%s7 + $0x18] sm:$0xf]
      %v1233 = vld [vmem:[%s7 + $0x1c] sm:$0xf]
      %v1234 = vld [vmem:[%s7 + $0x20] sm:$0xf]
      %v1235 = vld [vmem:[%s7 + $0x24] sm:$0xf]
      %v1236 = vld [vmem:[%s7 + $0x28] sm:$0xf]
      %v1237 = vld [vmem:[%s7 + $0x2c] sm:$0xf]
      %v1238 = vld [vmem:[%s7 + $0x30] sm:$0xf]
      %v1239 = vld [vmem:[%s7 + $0x34] sm:$0xf]
      %v1240 = vld [vmem:[%s7 + $0x38] sm:$0xf]
      %v1241 = vld [vmem:[%s7 + $0x3c] sm:$0xf]
      %v1242 = vld [vmem:[%s7 + $0x40] sm:$0xf]
      %v1243 = vld [vmem:[%s7 + $0x44] sm:$0xf]
      %v1244 = vld [vmem:[%s7 + $0x48] sm:$0xf]
      %v1245 = vld [vmem:[%s7 + $0x4c] sm:$0xf]
      %v1246 = vld [vmem:[%s7 + $0x50] sm:$0xf]
      %v1247 = vld [vmem:[%s7 + $0x54] sm:$0xf]
      %v1248 = vld [vmem:[%s7 + $0x58] sm:$0xf]
      %v1249 = vld [vmem:[%s7 + $0x5c] sm:$0xf]
      %v1250 = vld [vmem:[%s7 + $0x60] sm:$0xf]
      %v1251 = vld [vmem:[%s7 + $0x64] sm:$0xf]
      %v1252 = vld [vmem:[%s7 + $0x68] sm:$0xf]
      %v1253 = vld [vmem:[%s7 + $0x6c] sm:$0xf]
      %v1254 = vld [vmem:[%s7 + $0x70] sm:$0xf]
      %v1255 = vld [vmem:[%s7 + $0x74] sm:$0xf]
      %v1256 = vld [vmem:[%s7 + $0x78] sm:$0xf]
      %v1257 = vld [vmem:[%s7 + $0x7c] sm:$0xf]
      %v1258 = vld [vmem:[%s8] sm:$0x1]
      %v1260 = vlaneseq
      %v1261 = vshrl.u32 %v1260, 7
      %v1262 = vsub.s32 0, %v1261
      %v1263 = vrot.slane %v1258, %v1262
      %v1297 = vunpack.c.l.b16 %v1226
      %v1298 = vunpack.c.l.b16 %v1227
      %v1299 = vunpack.c.l.b16 %v1228
      %v1300 = vunpack.c.l.b16 %v1229
      %v1301 = vunpack.c.l.b16 %v1230
      %v1302 = vunpack.c.l.b16 %v1231
      %v1303 = vunpack.c.l.b16 %v1232
      %v1304 = vunpack.c.l.b16 %v1233
      %v1305 = vunpack.c.l.b16 %v1234
      %v1306 = vunpack.c.l.b16 %v1235
      %v1307 = vunpack.c.l.b16 %v1236
      %v1308 = vunpack.c.l.b16 %v1237
      %v1309 = vunpack.c.l.b16 %v1238
      %v1310 = vunpack.c.l.b16 %v1239
      %v1311 = vunpack.c.l.b16 %v1240
      %v1312 = vunpack.c.l.b16 %v1241
      %v1313 = vunpack.c.l.b16 %v1242
      %v1314 = vunpack.c.l.b16 %v1243
      %v1315 = vunpack.c.l.b16 %v1244
      %v1316 = vunpack.c.l.b16 %v1245
      %v1317 = vunpack.c.l.b16 %v1246
      %v1318 = vunpack.c.l.b16 %v1247
      %v1319 = vunpack.c.l.b16 %v1248
      %v1320 = vunpack.c.l.b16 %v1249
      %v1321 = vunpack.c.l.b16 %v1250
      %v1322 = vunpack.c.l.b16 %v1251
      %v1323 = vunpack.c.l.b16 %v1252
      %v1324 = vunpack.c.l.b16 %v1253
      %v1325 = vunpack.c.l.b16 %v1254
      %v1326 = vunpack.c.l.b16 %v1255
      %v1327 = vunpack.c.l.b16 %v1256
      %v1328 = vunpack.c.l.b16 %v1257
      %v1329 = vpack.c.b16 %v1298, %v1297
      %v1330 = vpack.c.b16 %v1300, %v1299
      %v1331 = vpack.c.b16 %v1302, %v1301
      %v1332 = vpack.c.b16 %v1304, %v1303
      %v1333 = vpack.c.b16 %v1306, %v1305
      %v1334 = vpack.c.b16 %v1308, %v1307
      %v1335 = vpack.c.b16 %v1310, %v1309
      %v1336 = vpack.c.b16 %v1312, %v1311
      %v1337 = vpack.c.b16 %v1314, %v1313
      %v1338 = vpack.c.b16 %v1316, %v1315
      %v1339 = vpack.c.b16 %v1318, %v1317
      %v1340 = vpack.c.b16 %v1320, %v1319
      %v1341 = vpack.c.b16 %v1322, %v1321
      %v1342 = vpack.c.b16 %v1324, %v1323
      %v1343 = vpack.c.b16 %v1326, %v1325
      %v1344 = vpack.c.b16 %v1328, %v1327
      %1361 = vmatprep.subr.bf16.mxu0 0
      %1362 = vmatpush1.bf16.msra.mxu0 %v1329
      %1363 = vmatprep.subr.bf16.mxu0 0
      %1364 = vmatpush1.bf16.msra.mxu0 %v1330
      %1365 = vmatprep.subr.bf16.mxu0 0
      %1366 = vmatpush1.bf16.msra.mxu0 %v1331
      %1367 = vmatprep.subr.bf16.mxu0 0
      %1368 = vmatpush1.bf16.msra.mxu0 %v1332
      %1369 = vmatprep.subr.bf16.mxu0 0
      %1370 = vmatpush1.bf16.msra.mxu0 %v1333
      %1371 = vmatprep.subr.bf16.mxu0 0
      %1372 = vmatpush1.bf16.msra.mxu0 %v1334
      %1373 = vmatprep.subr.bf16.mxu0 0
      %1374 = vmatpush1.bf16.msra.mxu0 %v1335
      %1375 = vmatprep.subr.bf16.mxu0 0
      %1376 = vmatpush1.bf16.msra.mxu0 %v1336
      %1377 = vmatprep.subr.bf16.mxu0 0
      %1378 = vmatpush1.bf16.msra.mxu0 %v1337
      %1379 = vmatprep.subr.bf16.mxu0 0
      %1380 = vmatpush1.bf16.msra.mxu0 %v1338
      %1381 = vmatprep.subr.bf16.mxu0 0
      %1382 = vmatpush1.bf16.msra.mxu0 %v1339
      %1383 = vmatprep.subr.bf16.mxu0 0
      %1384 = vmatpush1.bf16.msra.mxu0 %v1340
      %1385 = vmatprep.subr.bf16.mxu0 0
      %1386 = vmatpush1.bf16.msra.mxu0 %v1341
      %1387 = vmatprep.subr.bf16.mxu0 0
      %1388 = vmatpush1.bf16.msra.mxu0 %v1342
      %1389 = vmatprep.subr.bf16.mxu0 0
      %1390 = vmatpush1.bf16.msra.mxu0 %v1343
      %1391 = vmatprep.subr.bf16.mxu0 0
      %1392 = vmatpush1.bf16.msra.mxu0 %v1344
      %1393 = vmatprep.mubr.bf16.mxu0 %v1211
      %1394 = vmatmul.mubr.bf16.gmra.mrb[0].mxu0 %v1210
      %v1395 = vpop.f32.mrb[0].mxu0
      %v1396 = vadd.f32 %v1263, %v1395
      %v1397 = vpop.f32.mrb[0].mxu0
      %v1398 = vpop.f32.mrb[0].mxu0
      %v1399 = vadd.f32 %v1263, %v1398
      %v1400 = vpop.f32.mrb[0].mxu0
      %1401 = vmatprep.mubr.bf16.mxu0 %v1213
      %1402 = vmatmul.mubr.bf16.gmra.mrb[0].mxu0 %v1212
      %v1403 = vpop.f32.mrb[0].mxu0
      %v1404 = vadd.f32 %v1263, %v1403
      %v1405 = vpop.f32.mrb[0].mxu0
      %v1406 = vpop.f32.mrb[0].mxu0
      %v1407 = vadd.f32 %v1263, %v1406
      %v1408 = vpop.f32.mrb[0].mxu0
      %1409 = vmatprep.mubr.bf16.mxu0 %v1215
      %1410 = vmatmul.mubr.bf16.gmra.mrb[0].mxu0 %v1214
      %v1411 = vpop.f32.mrb[0].mxu0
      %v1412 = vadd.f32 %v1263, %v1411
      %v1413 = vpop.f32.mrb[0].mxu0
      %v1414 = vpop.f32.mrb[0].mxu0
      %v1415 = vadd.f32 %v1263, %v1414
      %v1416 = vpop.f32.mrb[0].mxu0
      %1417 = vmatprep.mubr.bf16.mxu0 %v1217
      %1418 = vmatmul.mubr.bf16.gmra.mrb[0].mxu0 %v1216
      %v1419 = vpop.f32.mrb[0].mxu0
      %v1420 = vadd.f32 %v1263, %v1419
      %v1421 = vpop.f32.mrb[0].mxu0
      %v1422 = vpop.f32.mrb[0].mxu0
      %v1423 = vadd.f32 %v1263, %v1422
      %v1424 = vpop.f32.mrb[0].mxu0
      %1425 = vmatprep.mubr.bf16.mxu0 %v1219
      %1426 = vmatmul.mubr.bf16.gmra.mrb[0].mxu0 %v1218
      %v1427 = vpop.f32.mrb[0].mxu0
      %v1428 = vadd.f32 %v1263, %v1427
      %v1429 = vpop.f32.mrb[0].mxu0
      %v1430 = vpop.f32.mrb[0].mxu0
      %v1431 = vadd.f32 %v1263, %v1430
      %v1432 = vpop.f32.mrb[0].mxu0
      %1433 = vmatprep.mubr.bf16.mxu0 %v1221
      %1434 = vmatmul.mubr.bf16.gmra.mrb[0].mxu0 %v1220
      %v1435 = vpop.f32.mrb[0].mxu0
      %v1436 = vadd.f32 %v1263, %v1435
      %v1437 = vpop.f32.mrb[0].mxu0
      %v1438 = vpop.f32.mrb[0].mxu0
      %v1439 = vadd.f32 %v1263, %v1438
      %v1440 = vpop.f32.mrb[0].mxu0
      %1441 = vmatprep.mubr.bf16.mxu0 %v1223
      %1442 = vmatmul.mubr.bf16.gmra.mrb[0].mxu0 %v1222
      %v1443 = vpop.f32.mrb[0].mxu0
      %v1444 = vadd.f32 %v1263, %v1443
      %v1445 = vpop.f32.mrb[0].mxu0
      %v1446 = vpop.f32.mrb[0].mxu0
      %v1447 = vadd.f32 %v1263, %v1446
      %v1448 = vpop.f32.mrb[0].mxu0
      %1449 = vmatprep.mubr.bf16.mxu0 %v1225
      %1450 = vmatmul.mubr.bf16.gmra.mrb[0].mxu0 %v1224
      %v1451 = vpop.f32.mrb[0].mxu0
      %v1452 = vadd.f32 %v1263, %v1451
      %v1453 = vpop.f32.mrb[0].mxu0
      %v1454 = vpop.f32.mrb[0].mxu0
      %v1455 = vadd.f32 %v1263, %v1454
      %v1456 = vpop.f32.mrb[0].mxu0
      %1457 = vdwg.mxu0
      %1458 = vxpose.xlu0.b32.start [1/16] %v1396, 128
      %1459 = vxpose.xlu0.b32.cont [2/16] %v1399, 128
      %1460 = vxpose.xlu0.b32.cont [3/16] %v1404, 128
      %1461 = vxpose.xlu0.b32.cont [4/16] %v1407, 128
      %1462 = vxpose.xlu0.b32.cont [5/16] %v1412, 128
      %1463 = vxpose.xlu0.b32.cont [6/16] %v1415, 128
      %1464 = vxpose.xlu0.b32.cont [7/16] %v1420, 128
      %1465 = vxpose.xlu0.b32.cont [8/16] %v1423, 128
      %1466 = vxpose.xlu0.b32.cont [9/16] %v1428, 128
      %1467 = vxpose.xlu0.b32.cont [10/16] %v1431, 128
      %1468 = vxpose.xlu0.b32.cont [11/16] %v1436, 128
      %1469 = vxpose.xlu0.b32.cont [12/16] %v1439, 128
      %1470 = vxpose.xlu0.b32.cont [13/16] %v1444, 128
      %1471 = vxpose.xlu0.b32.cont [14/16] %v1447, 128
      %1472 = vxpose.xlu0.b32.cont [15/16] %v1452, 128
      %1473 = vxpose.xlu0.b32.end [16/16] %v1455, 128
      %v1474 = vpop.trf.xlu0
      %v1475 = vpop.trf.xlu0
      %v1476 = vpop.trf.xlu0
      %v1477 = vpop.trf.xlu0
      %v1478 = vpop.trf.xlu0
      %v1479 = vpop.trf.xlu0
      %v1480 = vpop.trf.xlu0
      %v1481 = vpop.trf.xlu0
      %v1482 = vpop.trf.xlu0
      %v1483 = vpop.trf.xlu0
      %v1484 = vpop.trf.xlu0
      %v1485 = vpop.trf.xlu0
      %v1486 = vpop.trf.xlu0
      %v1487 = vpop.trf.xlu0
      %v1488 = vpop.trf.xlu0
      %v1489 = vpop.trf.xlu0
      %1490 = vst [vmem:[%s354] sm:$0xff] %v1474
      %p1491 = scmp.lt.s32.totalorder %s20, 1
      %s1492 = scalar_select %p1491, %s20, 1
      %s1493 = smul.addr %s1492, 8
      %s1494 = scalar_lea.vmem %s9, %s1493
      // Predicated region
      $region57: #{critic_forward.1} parent=55 // pred_check
        %p1495 = pneg %p237
      $region58: #{critic_forward.1} parent=55 // pred_check_branch
        %1497 = sbr.rel (%p1495) target = $region60
      $region59: #{critic_forward.1} parent=55 // pred_region
        _
      $region60: #{critic_forward.1} parent=55 // pred_fallthru
        _
    $region56: #{critic_forward.1} parent=5 // pred_fallthru
      _
    %p1498 = scmp.le.s32.totalorder 2, %s15
    // Predicated region
    $region61: #{critic_forward.1} parent=5 // pred_check
      %p1499 = pneg %p1498
    $region62: #{critic_forward.1} parent=5 // pred_check_branch
      %1501 = sbr.rel (%p1499) target = $region64
    $region63: #{critic_forward.1} parent=5 // pred_region
      %s1502 = ssub.s32 %s15, 2
      // Predicated region
      $region65: #{critic_forward.1} parent=63 // pred_check
        %p1503 = pneg %p243
      $region66: #{critic_forward.1} parent=63 // pred_check_branch
        %1505 = sbr.rel (%p1503) target = $region68
      $region67: #{critic_forward.1} parent=63 // pred_region
        %p1506 = scmp.lt.s32.totalorder %s21, 1
        %s1507 = scalar_select %p1506, %s21, 1
        %s1508 = smul.addr %s1507, 8
        %s1509 = scalar_lea.vmem %s9, %s1508
      $region68: #{critic_forward.1} parent=63 // pred_fallthru
        _
    $region64: #{critic_forward.1} parent=5 // pred_fallthru
      _
  $region6: #{critic_forward.1} parent=0 // loop_footer
    %s19 = sadd.s32 1, %s15
  $region7: #{critic_forward.1} parent=0 // loop_footer_branch
    %14 = sbr.rel target = $region3
  $region8: #{critic_forward.1} parent=0 // loop_exit
    _

</llo_original>
